<compile_context>
chip_gen: v7x
topology: tpu7x:2x2x1
jax: 0.10.0
libtpu: 0.0.40
codegen_flags: <defaults>
</compile_context>

<pallas_src>
import functools

import jax
import jax.numpy as jnp
from jax.experimental import pallas as pl
from jax.experimental.pallas import tpu as pltpu

LANES = 128                  # lane width of a vreg
SUBLANES = 8                 # sublanes per vreg
GRANULE = SUBLANES * LANES   # 1024-row batch granule -> (8, 128)-dense blocks
DEFAULT_TILE_B = 32768       # batch rows per grid step


def _round_up(n, m):
    return ((n + m - 1) // m) * m


def mlp_kernel(params_ref, x_ref, o_ref, *, hidden):
    """Feature-major MLP tile.

    params_ref: (23,) f32 in SMEM, layout [w1 (in*hid), b1 (hid), w2 (hid*out), b2 (out)]
    x_ref:      (IN, TB_SUB, 128) f32 in VMEM   (batch mapped to sublane/lane)
    o_ref:      (OUT, TB_SUB, 128) f32 in VMEM
    Every contraction is an unrolled scalar-splat * row MAC on the VPU; the
    tiny K/N (4, 3, 2) would waste the MXU.
    """
    in_features = x_ref.shape[0]
    out_features = o_ref.shape[0]

    w1_off = 0
    b1_off = in_features * hidden
    w2_off = b1_off + hidden
    b2_off = w2_off + hidden * out_features

    x = x_ref[...]                                   # (IN, TB_SUB, 128)

    # ---- Layer 1: h_j = relu(b1[j] + sum_k w1[k, j] * x[k]) ---------------
    h_rows = []
    for j in range(hidden):
        row = params_ref[b1_off + j] + params_ref[w1_off + j] * x[0]
        for k in range(1, in_features):
            row = row + params_ref[w1_off + k * hidden + j] * x[k]
        h_rows.append(jnp.maximum(row, 0.0))         # (TB_SUB, 128)

    # ---- Layer 2: out_i = b2[i] + sum_j w2[j, i] * h_j ---------------------
    for i in range(out_features):
        out = params_ref[b2_off + i] + params_ref[w2_off + i] * h_rows[0]
        for j in range(1, hidden):
            out = out + params_ref[w2_off + j * out_features + i] * h_rows[j]
        o_ref[i] = out.astype(o_ref.dtype)           # full-width unmasked store


def torch_mlp_forward(x, w1, b1, w2, b2, *, max_tile_b=DEFAULT_TILE_B):
    """Pallas equivalent of TestTorchClass.forward.

    x : (B, 4) float32
    w1: (4, 3), b1: (3,)   (transposed vs. torch nn.Linear weight layout)
    w2: (3, 2), b2: (2,)
    returns logits (B, 2) float32
    """
    B, in_features = x.shape
    hidden = w1.shape[1]
    out_features = w2.shape[1]

    # All 23 parameters in one flat SMEM vector (scalar-splat MAC weights).
    params = jnp.concatenate(
        [w1.reshape(-1), b1.reshape(-1), w2.reshape(-1), b2.reshape(-1)]
    ).astype(jnp.float32)

    # --- Batch tiling: tight padding + >=2 grid steps when possible ---------
    b_lane = _round_up(B, GRANULE)
    n_steps = pl.cdiv(b_lane, max_tile_b)
    if n_steps < 2 and b_lane >= 2 * GRANULE:
        n_steps = 2                      # give v7x's second TensorCore work
    tile_b = _round_up(pl.cdiv(b_lane, n_steps), GRANULE)
    n_steps = pl.cdiv(b_lane, tile_b)
    b_padded = n_steps * tile_b
    tb_sub = tile_b // LANES
    bsub_padded = b_padded // LANES

    # Feature-major, lane-mapped batch: (B, IN) -> (IN, B_pad//128, 128).
    xt = jnp.pad(x.T, ((0, 0), (0, b_padded - B)))
    xt = xt.reshape(in_features, bsub_padded, LANES)

    kernel = functools.partial(mlp_kernel, hidden=hidden)

    out = pl.pallas_call(
        kernel,
        out_shape=jax.ShapeDtypeStruct((out_features, bsub_padded, LANES), jnp.float32),
        grid=(n_steps,),
        in_specs=[
            # 23 scalars, whole array resident in SMEM.
            pl.BlockSpec(memory_space=pltpu.MemorySpace.SMEM),
            # x: tiled over batch, software-pipelined by Pallas.
            pl.BlockSpec((in_features, tb_sub, LANES), lambda i: (0, i, 0)),
        ],
        # Narrow feature-major output block: dense (sublane, lane) stores.
        out_specs=pl.BlockSpec((out_features, tb_sub, LANES), lambda i: (0, i, 0)),
        compiler_params=pltpu.CompilerParams(
            dimension_semantics=("parallel",),   # shard batch across TCs on v7x
        ),
    )(params, xt)

    # Cheap layout plumbing (2 rows): (OUT, Bsub, 128) -> (B, OUT).
    return out.reshape(out_features, b_padded)[:, :B].T


def init_params(key, input_size=4):
    """Deterministic init mimicking PyTorch nn.Linear default
    (U[-1/sqrt(fan_in), +1/sqrt(fan_in)])."""
    k1, k2, k3, k4 = jax.random.split(key, 4)
    bound1 = 1.0 / jnp.sqrt(jnp.float32(input_size))
    bound2 = 1.0 / jnp.sqrt(jnp.float32(3))
    w1 = jax.random.uniform(k1, (input_size, 3), jnp.float32, -bound1, bound1)
    b1 = jax.random.uniform(k2, (3,), jnp.float32, -bound1, bound1)
    w2 = jax.random.uniform(k3, (3, 2), jnp.float32, -bound2, bound2)
    b2 = jax.random.uniform(k4, (2,), jnp.float32, -bound2, bound2)
    return w1, b1, w2, b2


if __name__ == "__main__":
    key = jax.random.PRNGKey(0)
    k_x, k_p = jax.random.split(key)

    batch, input_size = 8, 4
    x = jax.random.normal(k_x, (batch, input_size), jnp.float32)
    w1, b1, w2, b2 = init_params(k_p, input_size)

    # Keep padding / transpose / slice fused in one jit with the pallas_call.
    fwd = jax.jit(torch_mlp_forward)
    logits = fwd(x, w1, b1, w2, b2)
    jax.block_until_ready(logits)

    # Reference check in plain JAX.
    ref = jnp.maximum(x @ w1 + b1[None, :], 0.0) @ w2 + b2[None, :]
    assert logits.shape == (batch, 2)
    assert jnp.allclose(logits, ref, atol=1e-5, rtol=1e-5)

    print("KERNEL_OK")
</pallas_src>

<mosaic_0001>
module attributes {stable_mosaic.version = 11 : i64} {
  func.func @mlp_kernel(%arg0: i32, %arg1: memref<23xf32, #tpu.memory_space<smem>>, %arg2: memref<4x8x128xf32, #tpu.memory_space<vmem>>, %arg3: memref<2x8x128xf32, #tpu.memory_space<vmem>>) attributes {dimension_semantics = [#tpu.dimension_semantics<parallel>], iteration_bounds = array<i64: 1>, scalar_prefetch = 0 : i64, scratch_operands = 0 : i64, tpu.core_type = #tpu.core_type<tc>, window_params = [{transform_indices = @transform_0, window_bounds = array<i64: 23>}, {transform_indices = @transform_1, window_bounds = array<i64: 4, 8, 128>}, {transform_indices = @transform_2, window_bounds = array<i64: 2, 8, 128>}]} {
    %c0 = arith.constant 0 : index
    %c0_0 = arith.constant 0 : index
    %c0_1 = arith.constant 0 : index
    %0 = vector.load %arg2[%c0, %c0_0, %c0_1] : memref<4x8x128xf32, #tpu.memory_space<vmem>>, vector<4x8x128xf32>
    %c12 = arith.constant 12 : index
    %1 = memref.load %arg1[%c12] : memref<23xf32, #tpu.memory_space<smem>>
    %c0_2 = arith.constant 0 : index
    %2 = memref.load %arg1[%c0_2] : memref<23xf32, #tpu.memory_space<smem>>
    %3 = vector.extract_strided_slice %0 {offsets = [0, 0, 0], sizes = [1, 8, 128], strides = [1, 1, 1]} : vector<4x8x128xf32> to vector<1x8x128xf32>
    %4 = vector.shape_cast %3 : vector<1x8x128xf32> to vector<8x128xf32>
    %5 = vector.broadcast %2 : f32 to vector<8x128xf32>
    %6 = arith.mulf %5, %4 : vector<8x128xf32>
    %7 = vector.broadcast %1 : f32 to vector<8x128xf32>
    %8 = arith.addf %7, %6 : vector<8x128xf32>
    %c3 = arith.constant 3 : index
    %9 = memref.load %arg1[%c3] : memref<23xf32, #tpu.memory_space<smem>>
    %10 = vector.extract_strided_slice %0 {offsets = [1, 0, 0], sizes = [1, 8, 128], strides = [1, 1, 1]} : vector<4x8x128xf32> to vector<1x8x128xf32>
    %11 = vector.shape_cast %10 : vector<1x8x128xf32> to vector<8x128xf32>
    %12 = vector.broadcast %9 : f32 to vector<8x128xf32>
    %13 = arith.mulf %12, %11 : vector<8x128xf32>
    %14 = arith.addf %8, %13 : vector<8x128xf32>
    %c6 = arith.constant 6 : index
    %15 = memref.load %arg1[%c6] : memref<23xf32, #tpu.memory_space<smem>>
    %16 = vector.extract_strided_slice %0 {offsets = [2, 0, 0], sizes = [1, 8, 128], strides = [1, 1, 1]} : vector<4x8x128xf32> to vector<1x8x128xf32>
    %17 = vector.shape_cast %16 : vector<1x8x128xf32> to vector<8x128xf32>
    %18 = vector.broadcast %15 : f32 to vector<8x128xf32>
    %19 = arith.mulf %18, %17 : vector<8x128xf32>
    %20 = arith.addf %14, %19 : vector<8x128xf32>
    %c9 = arith.constant 9 : index
    %21 = memref.load %arg1[%c9] : memref<23xf32, #tpu.memory_space<smem>>
    %22 = vector.extract_strided_slice %0 {offsets = [3, 0, 0], sizes = [1, 8, 128], strides = [1, 1, 1]} : vector<4x8x128xf32> to vector<1x8x128xf32>
    %23 = vector.shape_cast %22 : vector<1x8x128xf32> to vector<8x128xf32>
    %24 = vector.broadcast %21 : f32 to vector<8x128xf32>
    %25 = arith.mulf %24, %23 : vector<8x128xf32>
    %26 = arith.addf %20, %25 : vector<8x128xf32>
    %cst = arith.constant 0.000000e+00 : f32
    %27 = vector.broadcast %cst : f32 to vector<8x128xf32>
    %28 = arith.maximumf %26, %27 : vector<8x128xf32>
    %c13 = arith.constant 13 : index
    %29 = memref.load %arg1[%c13] : memref<23xf32, #tpu.memory_space<smem>>
    %c1 = arith.constant 1 : index
    %30 = memref.load %arg1[%c1] : memref<23xf32, #tpu.memory_space<smem>>
    %31 = vector.extract_strided_slice %0 {offsets = [0, 0, 0], sizes = [1, 8, 128], strides = [1, 1, 1]} : vector<4x8x128xf32> to vector<1x8x128xf32>
    %32 = vector.shape_cast %31 : vector<1x8x128xf32> to vector<8x128xf32>
    %33 = vector.broadcast %30 : f32 to vector<8x128xf32>
    %34 = arith.mulf %33, %32 : vector<8x128xf32>
    %35 = vector.broadcast %29 : f32 to vector<8x128xf32>
    %36 = arith.addf %35, %34 : vector<8x128xf32>
    %c4 = arith.constant 4 : index
    %37 = memref.load %arg1[%c4] : memref<23xf32, #tpu.memory_space<smem>>
    %38 = vector.extract_strided_slice %0 {offsets = [1, 0, 0], sizes = [1, 8, 128], strides = [1, 1, 1]} : vector<4x8x128xf32> to vector<1x8x128xf32>
    %39 = vector.shape_cast %38 : vector<1x8x128xf32> to vector<8x128xf32>
    %40 = vector.broadcast %37 : f32 to vector<8x128xf32>
    %41 = arith.mulf %40, %39 : vector<8x128xf32>
    %42 = arith.addf %36, %41 : vector<8x128xf32>
    %c7 = arith.constant 7 : index
    %43 = memref.load %arg1[%c7] : memref<23xf32, #tpu.memory_space<smem>>
    %44 = vector.extract_strided_slice %0 {offsets = [2, 0, 0], sizes = [1, 8, 128], strides = [1, 1, 1]} : vector<4x8x128xf32> to vector<1x8x128xf32>
    %45 = vector.shape_cast %44 : vector<1x8x128xf32> to vector<8x128xf32>
    %46 = vector.broadcast %43 : f32 to vector<8x128xf32>
    %47 = arith.mulf %46, %45 : vector<8x128xf32>
    %48 = arith.addf %42, %47 : vector<8x128xf32>
    %c10 = arith.constant 10 : index
    %49 = memref.load %arg1[%c10] : memref<23xf32, #tpu.memory_space<smem>>
    %50 = vector.extract_strided_slice %0 {offsets = [3, 0, 0], sizes = [1, 8, 128], strides = [1, 1, 1]} : vector<4x8x128xf32> to vector<1x8x128xf32>
    %51 = vector.shape_cast %50 : vector<1x8x128xf32> to vector<8x128xf32>
    %52 = vector.broadcast %49 : f32 to vector<8x128xf32>
    %53 = arith.mulf %52, %51 : vector<8x128xf32>
    %54 = arith.addf %48, %53 : vector<8x128xf32>
    %cst_3 = arith.constant 0.000000e+00 : f32
    %55 = vector.broadcast %cst_3 : f32 to vector<8x128xf32>
    %56 = arith.maximumf %54, %55 : vector<8x128xf32>
    %c14 = arith.constant 14 : index
    %57 = memref.load %arg1[%c14] : memref<23xf32, #tpu.memory_space<smem>>
    %c2 = arith.constant 2 : index
    %58 = memref.load %arg1[%c2] : memref<23xf32, #tpu.memory_space<smem>>
    %59 = vector.extract_strided_slice %0 {offsets = [0, 0, 0], sizes = [1, 8, 128], strides = [1, 1, 1]} : vector<4x8x128xf32> to vector<1x8x128xf32>
    %60 = vector.shape_cast %59 : vector<1x8x128xf32> to vector<8x128xf32>
    %61 = vector.broadcast %58 : f32 to vector<8x128xf32>
    %62 = arith.mulf %61, %60 : vector<8x128xf32>
    %63 = vector.broadcast %57 : f32 to vector<8x128xf32>
    %64 = arith.addf %63, %62 : vector<8x128xf32>
    %c5 = arith.constant 5 : index
    %65 = memref.load %arg1[%c5] : memref<23xf32, #tpu.memory_space<smem>>
    %66 = vector.extract_strided_slice %0 {offsets = [1, 0, 0], sizes = [1, 8, 128], strides = [1, 1, 1]} : vector<4x8x128xf32> to vector<1x8x128xf32>
    %67 = vector.shape_cast %66 : vector<1x8x128xf32> to vector<8x128xf32>
    %68 = vector.broadcast %65 : f32 to vector<8x128xf32>
    %69 = arith.mulf %68, %67 : vector<8x128xf32>
    %70 = arith.addf %64, %69 : vector<8x128xf32>
    %c8 = arith.constant 8 : index
    %71 = memref.load %arg1[%c8] : memref<23xf32, #tpu.memory_space<smem>>
    %72 = vector.extract_strided_slice %0 {offsets = [2, 0, 0], sizes = [1, 8, 128], strides = [1, 1, 1]} : vector<4x8x128xf32> to vector<1x8x128xf32>
    %73 = vector.shape_cast %72 : vector<1x8x128xf32> to vector<8x128xf32>
    %74 = vector.broadcast %71 : f32 to vector<8x128xf32>
    %75 = arith.mulf %74, %73 : vector<8x128xf32>
    %76 = arith.addf %70, %75 : vector<8x128xf32>
    %c11 = arith.constant 11 : index
    %77 = memref.load %arg1[%c11] : memref<23xf32, #tpu.memory_space<smem>>
    %78 = vector.extract_strided_slice %0 {offsets = [3, 0, 0], sizes = [1, 8, 128], strides = [1, 1, 1]} : vector<4x8x128xf32> to vector<1x8x128xf32>
    %79 = vector.shape_cast %78 : vector<1x8x128xf32> to vector<8x128xf32>
    %80 = vector.broadcast %77 : f32 to vector<8x128xf32>
    %81 = arith.mulf %80, %79 : vector<8x128xf32>
    %82 = arith.addf %76, %81 : vector<8x128xf32>
    %cst_4 = arith.constant 0.000000e+00 : f32
    %83 = vector.broadcast %cst_4 : f32 to vector<8x128xf32>
    %84 = arith.maximumf %82, %83 : vector<8x128xf32>
    %c21 = arith.constant 21 : index
    %85 = memref.load %arg1[%c21] : memref<23xf32, #tpu.memory_space<smem>>
    %c15 = arith.constant 15 : index
    %86 = memref.load %arg1[%c15] : memref<23xf32, #tpu.memory_space<smem>>
    %87 = vector.broadcast %86 : f32 to vector<8x128xf32>
    %88 = arith.mulf %87, %28 : vector<8x128xf32>
    %89 = vector.broadcast %85 : f32 to vector<8x128xf32>
    %90 = arith.addf %89, %88 : vector<8x128xf32>
    %c17 = arith.constant 17 : index
    %91 = memref.load %arg1[%c17] : memref<23xf32, #tpu.memory_space<smem>>
    %92 = vector.broadcast %91 : f32 to vector<8x128xf32>
    %93 = arith.mulf %92, %56 : vector<8x128xf32>
    %94 = arith.addf %90, %93 : vector<8x128xf32>
    %c19 = arith.constant 19 : index
    %95 = memref.load %arg1[%c19] : memref<23xf32, #tpu.memory_space<smem>>
    %96 = vector.broadcast %95 : f32 to vector<8x128xf32>
    %97 = arith.mulf %96, %84 : vector<8x128xf32>
    %98 = arith.addf %94, %97 : vector<8x128xf32>
    %c0_5 = arith.constant 0 : index
    %c0_6 = arith.constant 0 : index
    %c0_7 = arith.constant 0 : index
    %99 = vector.load %arg3[%c0_5, %c0_6, %c0_7] : memref<2x8x128xf32, #tpu.memory_space<vmem>>, vector<1x8x128xf32>
    %100 = vector.shape_cast %99 : vector<1x8x128xf32> to vector<8x128xf32>
    %101 = vector.shape_cast %98 : vector<8x128xf32> to vector<1x8x128xf32>
    tpu.vector_store %arg3[%c0_5, %c0_6, %c0_7], %101 {strides = array<i32>} : memref<2x8x128xf32, #tpu.memory_space<vmem>>, vector<1x8x128xf32>,
    %c22 = arith.constant 22 : index
    %102 = memref.load %arg1[%c22] : memref<23xf32, #tpu.memory_space<smem>>
    %c16 = arith.constant 16 : index
    %103 = memref.load %arg1[%c16] : memref<23xf32, #tpu.memory_space<smem>>
    %104 = vector.broadcast %103 : f32 to vector<8x128xf32>
    %105 = arith.mulf %104, %28 : vector<8x128xf32>
    %106 = vector.broadcast %102 : f32 to vector<8x128xf32>
    %107 = arith.addf %106, %105 : vector<8x128xf32>
    %c18 = arith.constant 18 : index
    %108 = memref.load %arg1[%c18] : memref<23xf32, #tpu.memory_space<smem>>
    %109 = vector.broadcast %108 : f32 to vector<8x128xf32>
    %110 = arith.mulf %109, %56 : vector<8x128xf32>
    %111 = arith.addf %107, %110 : vector<8x128xf32>
    %c20 = arith.constant 20 : index
    %112 = memref.load %arg1[%c20] : memref<23xf32, #tpu.memory_space<smem>>
    %113 = vector.broadcast %112 : f32 to vector<8x128xf32>
    %114 = arith.mulf %113, %84 : vector<8x128xf32>
    %115 = arith.addf %111, %114 : vector<8x128xf32>
    %c1_8 = arith.constant 1 : index
    %c0_9 = arith.constant 0 : index
    %c0_10 = arith.constant 0 : index
    %116 = vector.load %arg3[%c1_8, %c0_9, %c0_10] : memref<2x8x128xf32, #tpu.memory_space<vmem>>, vector<1x8x128xf32>
    %117 = vector.shape_cast %116 : vector<1x8x128xf32> to vector<8x128xf32>
    %118 = vector.shape_cast %115 : vector<8x128xf32> to vector<1x8x128xf32>
    tpu.vector_store %arg3[%c1_8, %c0_9, %c0_10], %118 {strides = array<i32>} : memref<2x8x128xf32, #tpu.memory_space<vmem>>, vector<1x8x128xf32>,
    return
  }
  func.func @transform_0(%arg0: i32) -> i32 {
    %c0_i32 = arith.constant 0 : i32
    %c0_i32_0 = arith.constant 0 : i32
    return %c0_i32 : i32
  }
  func.func @transform_1(%arg0: i32) -> (i32, i32, i32) {
    %c0_i32 = arith.constant 0 : i32
    %c0_i32_0 = arith.constant 0 : i32
    %c0_i32_1 = arith.constant 0 : i32
    return %c0_i32, %arg0, %c0_i32_0 : i32, i32, i32
  }
  func.func @transform_2(%arg0: i32) -> (i32, i32, i32) {
    %c0_i32 = arith.constant 0 : i32
    %c0_i32_0 = arith.constant 0 : i32
    %c0_i32_1 = arith.constant 0 : i32
    return %c0_i32, %arg0, %c0_i32_0 : i32, i32, i32
  }
}

</mosaic_0001>

<llo_original>
// kernel: torch_mlp_forward.1
$region0: #{torch_mlp_forward.1}
  #allocation0 [shape = 'u32[]', space=smem, size = 0x4, offset = 0x4, fixed_abs, tag = 'smem constant byte address 0x4 - core index']
  #allocation1 [shape = 'u32[144,128]{1,0:T(1,128)}', space=vmem, size = 0x12000, scoped, tag = 'internal scratch']
  %s0 = inlined_call_operand.vmem [shape: f32[23], index: 0, kind: input, shape index: {}]
  %s1 = inlined_call_operand.vmem [shape: f32[4,8,128], index: 1, kind: input, shape index: {}]
  %s2 = inlined_call_operand.vmem [shape: f32[2,8,128], index: 2, kind: output, shape index: {}]
  %s3 = sld [smem:[#allocation0]]
  $region22: #{torch_mlp_forward.1} parent=0
    _
  %s5 = ssub.s32 1, %s3
  %s6 = scalar_select 0, %s5, %s3
  $region1: #{torch_mlp_forward.1} parent=0
    #allocation2 [shape = 'u8[512]{0}', space=smem, size = 0x200, scoped, tag = 'input window, operand 0, single buffered']
    #allocation3 [shape = 's32[1]{0}', space=sflag, size = 0x4, scoped, tag = 'scoped memory for torch_mlp_forward.1']
    %7 = vsyncpa [#allocation3], 0
    // Predicated region
    $region2: #{torch_mlp_forward.1} parent=1 // pred_check
      _
    $region3: #{torch_mlp_forward.1} parent=1 // pred_check_branch
      %9 = sbr.rel (0) target = $region5
    $region4: #{torch_mlp_forward.1} parent=1 // pred_region
      %s11 = ssub.s32 16, 16
      %12 = vsyncadd [#allocation3], %s11
      %s14 = sshll.u32 %s0, 4
      %s15 = int_to_ptr.vmem [resolvable:$true] %s14
      %17 = dma.vmem_to_smem %s15, 16, [#allocation2], [#allocation3]
    $region5: #{torch_mlp_forward.1} parent=1 // pred_fallthru
      _
    // Predicated region
    $region6: #{torch_mlp_forward.1} parent=1 // pred_check
      _
    $region7: #{torch_mlp_forward.1} parent=1 // pred_check_branch
      %19 = sbr.rel (0) target = $region9
    $region8: #{torch_mlp_forward.1} parent=1 // pred_region
      _
    $region9: #{torch_mlp_forward.1} parent=1 // pred_fallthru
      _
    // Predicated region
    $region10: #{torch_mlp_forward.1} parent=1 // pred_check
      _
    $region11: #{torch_mlp_forward.1} parent=1 // pred_check_branch
      %21 = sbr.rel (0) target = $region13
    $region12: #{torch_mlp_forward.1} parent=1 // pred_region
      %22 = dma.done [#allocation3], 16
    $region13: #{torch_mlp_forward.1} parent=1 // pred_fallthru
      _
    %23 = sfence
    %v24 = vld [vmem:[%s1] sm:$0xff]
    %v25 = vld [vmem:[%s1 + $0x8] sm:$0xff]
    %v26 = vld [vmem:[%s1 + $0x10] sm:$0xff]
    %v27 = vld [vmem:[%s1 + $0x18] sm:$0xff]
    %s28 = sld [smem:[#allocation2 + $0xc]]
    %s29 = sld [smem:[#allocation2]]
    %v30 = vstv %s29
    %v31 = vmul.f32 %v30, %v24
    %v32 = vstv %s28
    %v33 = vadd.f32 %v32, %v31
    %s34 = sld [smem:[#allocation2 + $0x3]]
    %v35 = vstv %s34
    %v36 = vmul.f32 %v35, %v25
    %v37 = vadd.f32 %v33, %v36
    %s38 = sld [smem:[#allocation2 + $0x6]]
    %v39 = vstv %s38
    %v40 = vmul.f32 %v39, %v26
    %v41 = vadd.f32 %v37, %v40
    %s42 = sld [smem:[#allocation2 + $0x9]]
    %v43 = vstv %s42
    %v44 = vmul.f32 %v43, %v27
    %v45 = vadd.f32 %v41, %v44
    %v46 = vmax.f32 %v45, 0.0
    %s47 = sld [smem:[#allocation2 + $0xd]]
    %s48 = sld [smem:[#allocation2 + $0x1]]
    %v49 = vstv %s48
    %v50 = vmul.f32 %v49, %v24
    %v51 = vstv %s47
    %v52 = vadd.f32 %v51, %v50
    %s53 = sld [smem:[#allocation2 + $0x4]]
    %v54 = vstv %s53
    %v55 = vmul.f32 %v54, %v25
    %v56 = vadd.f32 %v52, %v55
    %s57 = sld [smem:[#allocation2 + $0x7]]
    %v58 = vstv %s57
    %v59 = vmul.f32 %v58, %v26
    %v60 = vadd.f32 %v56, %v59
    %s61 = sld [smem:[#allocation2 + $0xa]]
    %v62 = vstv %s61
    %v63 = vmul.f32 %v62, %v27
    %v64 = vadd.f32 %v60, %v63
    %v65 = vmax.f32 %v64, 0.0
    %s66 = sld [smem:[#allocation2 + $0xe]]
    %s67 = sld [smem:[#allocation2 + $0x2]]
    %v68 = vstv %s67
    %v69 = vmul.f32 %v68, %v24
    %v70 = vstv %s66
    %v71 = vadd.f32 %v70, %v69
    %s72 = sld [smem:[#allocation2 + $0x5]]
    %v73 = vstv %s72
    %v74 = vmul.f32 %v73, %v25
    %v75 = vadd.f32 %v71, %v74
    %s76 = sld [smem:[#allocation2 + $0x8]]
    %v77 = vstv %s76
    %v78 = vmul.f32 %v77, %v26
    %v79 = vadd.f32 %v75, %v78
    %s80 = sld [smem:[#allocation2 + $0xb]]
    %v81 = vstv %s80
    %v82 = vmul.f32 %v81, %v27
    %v83 = vadd.f32 %v79, %v82
    %v84 = vmax.f32 %v83, 0.0
    %s85 = sld [smem:[#allocation2 + $0x15]]
    %s86 = sld [smem:[#allocation2 + $0xf]]
    %v87 = vstv %s86
    %v88 = vmul.f32 %v87, %v46
    %v89 = vstv %s85
    %v90 = vadd.f32 %v89, %v88
    %s91 = sld [smem:[#allocation2 + $0x11]]
    %v92 = vstv %s91
    %v93 = vmul.f32 %v92, %v65
    %v94 = vadd.f32 %v90, %v93
    %s95 = sld [smem:[#allocation2 + $0x13]]
    %v96 = vstv %s95
    %v97 = vmul.f32 %v96, %v84
    %v98 = vadd.f32 %v94, %v97
    %99 = vst [vmem:[%s2] sm:$0xff] %v98
    %s100 = sld [smem:[#allocation2 + $0x16]]
    %s101 = sld [smem:[#allocation2 + $0x10]]
    %v102 = vstv %s101
    %v103 = vmul.f32 %v102, %v46
    %v104 = vstv %s100
    %v105 = vadd.f32 %v104, %v103
    %s106 = sld [smem:[#allocation2 + $0x12]]
    %v107 = vstv %s106
    %v108 = vmul.f32 %v107, %v65
    %v109 = vadd.f32 %v105, %v108
    %s110 = sld [smem:[#allocation2 + $0x14]]
    %v111 = vstv %s110
    %v112 = vmul.f32 %v111, %v84
    %v113 = vadd.f32 %v109, %v112
    %s114 = scalar_lea.vmem %s2, 8
    %115 = vst [vmem:[%s114] sm:$0xff] %v113
    // Predicated region
    $region14: #{torch_mlp_forward.1} parent=1 // pred_check
      _
    $region15: #{torch_mlp_forward.1} parent=1 // pred_check_branch
      %117 = sbr.rel (0) target = $region17
    $region16: #{torch_mlp_forward.1} parent=1 // pred_region
      _
    $region17: #{torch_mlp_forward.1} parent=1 // pred_fallthru
      _
    // Predicated region
    $region18: #{torch_mlp_forward.1} parent=1 // pred_check
      _
    $region19: #{torch_mlp_forward.1} parent=1 // pred_check_branch
      %119 = sbr.rel (0) target = $region21
    $region20: #{torch_mlp_forward.1} parent=1 // pred_region
      _
    $region21: #{torch_mlp_forward.1} parent=1 // pred_fallthru
      _
    %120 = vsyncpa [#allocation3], 1

</llo_original>
